<compile_context>
chip_gen: v5e
topology: v5e:2x2
jax: 0.10.0
libtpu: 0.0.40
codegen_flags: <defaults>
</compile_context>

<pallas_src>
import jax
import jax.numpy as jnp
from jax.experimental import pallas as pl
from jax.experimental.pallas import tpu as pltpu


def _round_up(v, m):
    return ((v + m - 1) // m) * m


def mlp2_kernel(x_ref, w1_ref, b1_ref, w2_ref, b2_ref, o_ref):
    # Cast the streamed f32 x tile to bf16 on the VPU (hidden under the DMA).
    x_bf = x_ref[...].astype(jnp.bfloat16)
    # fc1 on the MXU: (tile_b, I)bf16 @ (I, F)bf16 -> f32 accumulation.
    h = jnp.dot(x_bf, w1_ref[...], preferred_element_type=jnp.float32)
    # Bias + ReLU on the VPU in f32.
    h = jnp.maximum(h + b1_ref[...], 0.0)
    # fc2: single bf16 MXU pass, f32 accumulation, narrow (tile_b, 2) output.
    out = jnp.dot(h.astype(jnp.bfloat16), w2_ref[...],
                  preferred_element_type=jnp.float32)
    o_ref[...] = (out + b2_ref[...]).astype(o_ref.dtype)


def prepare_mlp2_params(w1, b1, w2, b2):
    """Convert PyTorch-layout params to kernel-ready layout ONCE.

    w1: (features, inputs)  fc1.weight     -> (inputs, features) bf16
    b1: (features,)         fc1.bias       -> (1, features) f32
    w2: (n_out, features)   fc2.weight     -> (features, n_out) bf16
    b2: (n_out,)            fc2.bias       -> (1, n_out) f32
    """
    w1_t = jnp.asarray(w1).T.astype(jnp.bfloat16)
    b1_2d = jnp.asarray(b1, jnp.float32).reshape(1, -1)
    w2_t = jnp.asarray(w2).T.astype(jnp.bfloat16)
    b2_2d = jnp.asarray(b2, jnp.float32).reshape(1, -1)
    return w1_t, b1_2d, w2_t, b2_2d


def mlp2_forward(x, params, *, tile_b=32768):
    """x: (B, inputs) f32.  Returns (B, n_out) in x.dtype."""
    w1_t, b1_2d, w2_t, b2_2d = params
    B, I = x.shape
    F_ = w1_t.shape[1]
    n_out = w2_t.shape[1]

    # Batch tile: multiple of 8 sublanes, never (much) larger than the batch,
    # and >= 2 grid steps whenever the batch allows it (v7x megacore split).
    tile_b = max(8, min(tile_b, _round_up(B, 8)))
    if B > 16 and B < 2 * tile_b:
        tile_b = max(8, _round_up(pl.cdiv(B, 2), 8))
    grid_b = pl.cdiv(B, tile_b)   # Pallas masks the partial trailing block.

    out = pl.pallas_call(
        mlp2_kernel,
        out_shape=jax.ShapeDtypeStruct((B, n_out), jnp.float32),
        grid=(grid_b,),
        in_specs=[
            pl.BlockSpec((tile_b, I), lambda i: (i, 0)),   # streamed x tiles
            pl.BlockSpec((I, F_), lambda i: (0, 0)),       # resident fc1 weight
            pl.BlockSpec((1, F_), lambda i: (0, 0)),       # resident fc1 bias
            pl.BlockSpec((F_, n_out), lambda i: (0, 0)),   # resident fc2 weight
            pl.BlockSpec((1, n_out), lambda i: (0, 0)),    # resident fc2 bias
        ],
        out_specs=pl.BlockSpec((tile_b, n_out), lambda i: (i, 0)),
        compiler_params=pltpu.CompilerParams(
            dimension_semantics=("parallel",),   # v7x: shard tiles over 2 TCs
            vmem_limit_bytes=48 * 1024 * 1024,   # headroom on v7x's 64 MiB VMEM
        ),
    )(x, w1_t, b1_2d, w2_t, b2_2d)

    return out.astype(x.dtype)


if __name__ == "__main__":
    # Small shapes implied by the module: batch=8, inputs=16, features=32.
    batch, inputs, features, n_out = 8, 16, 32, 2

    key = jax.random.PRNGKey(0)
    kx, kw1, kb1, kw2, kb2 = jax.random.split(key, 5)

    x = jax.random.normal(kx, (batch, inputs), dtype=jnp.float32)
    # PyTorch layouts: fc1.weight (features, inputs), fc1.bias (features,),
    # fc2.weight (2, features), fc2.bias (2,).
    w1 = jax.random.normal(kw1, (features, inputs), dtype=jnp.float32) * 0.1
    b1 = jax.random.normal(kb1, (features,), dtype=jnp.float32) * 0.1
    w2 = jax.random.normal(kw2, (n_out, features), dtype=jnp.float32) * 0.1
    b2 = jax.random.normal(kb2, (n_out,), dtype=jnp.float32) * 0.1

    params = prepare_mlp2_params(w1, b1, w2, b2)   # built once, reused per call

    def ref_fn(xv):
        # Pure-JAX reference matching the kernel's mixed-precision arithmetic.
        xr = xv.astype(jnp.bfloat16)
        w1r = w1.T.astype(jnp.bfloat16)
        h = jnp.maximum(
            jnp.dot(xr, w1r, preferred_element_type=jnp.float32) + b1[None, :],
            0.0)
        w2r = w2.T.astype(jnp.bfloat16)
        return jnp.dot(h.astype(jnp.bfloat16), w2r,
                       preferred_element_type=jnp.float32) + b2[None, :]

    # Toy batch (single grid step).
    out = jax.block_until_ready(mlp2_forward(x, params))
    assert out.shape == (batch, n_out)
    assert jnp.allclose(out, ref_fn(x), atol=2e-2, rtol=2e-2)

    # Larger, non-multiple batch exercising the pipelined batch grid and the
    # masked partial trailing block (no jnp.pad of x).
    xb = jax.random.normal(kx, (1000, inputs), dtype=jnp.float32)
    outb = jax.block_until_ready(mlp2_forward(xb, params, tile_b=256))
    assert outb.shape == (1000, n_out)
    assert jnp.allclose(outb, ref_fn(xb), atol=2e-2, rtol=2e-2)

    print("KERNEL_OK")
</pallas_src>

<mosaic_0001>
module attributes {stable_mosaic.version = 11 : i64} {
  func.func @mlp2_kernel(%arg0: i32, %arg1: memref<8x16xf32, #tpu.memory_space<vmem>>, %arg2: memref<16x32xbf16, #tpu.memory_space<vmem>>, %arg3: memref<1x32xf32, #tpu.memory_space<vmem>>, %arg4: memref<32x2xbf16, #tpu.memory_space<vmem>>, %arg5: memref<1x2xf32, #tpu.memory_space<vmem>>, %arg6: memref<8x2xf32, #tpu.memory_space<vmem>>) attributes {dimension_semantics = [#tpu.dimension_semantics<parallel>], iteration_bounds = array<i64: 1>, scalar_prefetch = 0 : i64, scratch_operands = 0 : i64, tpu.core_type = #tpu.core_type<tc>, window_params = [{transform_indices = @transform_0, window_bounds = array<i64: 8, 16>}, {pipeline_mode = #tpu.pipeline_mode<synchronous>, transform_indices = @transform_1, window_bounds = array<i64: 16, 32>}, {pipeline_mode = #tpu.pipeline_mode<synchronous>, transform_indices = @transform_2, window_bounds = array<i64: 1, 32>}, {pipeline_mode = #tpu.pipeline_mode<synchronous>, transform_indices = @transform_3, window_bounds = array<i64: 32, 2>}, {pipeline_mode = #tpu.pipeline_mode<synchronous>, transform_indices = @transform_4, window_bounds = array<i64: 1, 2>}, {transform_indices = @transform_5, window_bounds = array<i64: 8, 2>}]} {
    %c0 = arith.constant 0 : index
    %c0_0 = arith.constant 0 : index
    %0 = vector.load %arg1[%c0, %c0_0] : memref<8x16xf32, #tpu.memory_space<vmem>>, vector<8x16xf32>
    %1 = arith.truncf %0 : vector<8x16xf32> to vector<8x16xbf16>
    %c0_1 = arith.constant 0 : index
    %c0_2 = arith.constant 0 : index
    %2 = vector.load %arg2[%c0_1, %c0_2] : memref<16x32xbf16, #tpu.memory_space<vmem>>, vector<16x32xbf16>
    %cst = arith.constant dense<0.000000e+00> : vector<8x32xf32>
    %3 = tpu.matmul %1, %2, %cst {dimension_numbers = #tpu.dot_dimension_numbers<[1], [0], [0], [1], [0, 0, 1, 1], [], []>} : vector<8x16xbf16>, vector<16x32xbf16>, vector<8x32xf32> -> vector<8x32xf32>
    %c0_3 = arith.constant 0 : index
    %c0_4 = arith.constant 0 : index
    %4 = vector.load %arg3[%c0_3, %c0_4] : memref<1x32xf32, #tpu.memory_space<vmem>>, vector<1x32xf32>
    %5 = vector.broadcast %4 : vector<1x32xf32> to vector<8x32xf32>
    %6 = arith.addf %3, %5 : vector<8x32xf32>
    %cst_5 = arith.constant 0.000000e+00 : f32
    %7 = vector.broadcast %cst_5 : f32 to vector<8x32xf32>
    %8 = arith.maximumf %6, %7 : vector<8x32xf32>
    %9 = arith.truncf %8 : vector<8x32xf32> to vector<8x32xbf16>
    %c0_6 = arith.constant 0 : index
    %c0_7 = arith.constant 0 : index
    %10 = vector.load %arg4[%c0_6, %c0_7] : memref<32x2xbf16, #tpu.memory_space<vmem>>, vector<32x2xbf16>
    %cst_8 = arith.constant dense<0.000000e+00> : vector<8x2xf32>
    %11 = tpu.matmul %9, %10, %cst_8 {dimension_numbers = #tpu.dot_dimension_numbers<[1], [0], [0], [1], [0, 0, 1, 1], [], []>} : vector<8x32xbf16>, vector<32x2xbf16>, vector<8x2xf32> -> vector<8x2xf32>
    %c0_9 = arith.constant 0 : index
    %c0_10 = arith.constant 0 : index
    %12 = vector.load %arg5[%c0_9, %c0_10] : memref<1x2xf32, #tpu.memory_space<vmem>>, vector<1x2xf32>
    %13 = vector.broadcast %12 : vector<1x2xf32> to vector<8x2xf32>
    %14 = arith.addf %11, %13 : vector<8x2xf32>
    %c0_11 = arith.constant 0 : index
    %c0_12 = arith.constant 0 : index
    %15 = vector.load %arg6[%c0_11, %c0_12] : memref<8x2xf32, #tpu.memory_space<vmem>>, vector<8x2xf32>
    tpu.vector_store %arg6[%c0_11, %c0_12], %14 {strides = array<i32>} : memref<8x2xf32, #tpu.memory_space<vmem>>, vector<8x2xf32>,
    return
  }
  func.func @transform_0(%arg0: i32) -> (i32, i32) {
    %c0_i32 = arith.constant 0 : i32
    %c0_i32_0 = arith.constant 0 : i32
    return %arg0, %c0_i32 : i32, i32
  }
  func.func @transform_1(%arg0: i32) -> (i32, i32) {
    %c0_i32 = arith.constant 0 : i32
    %c0_i32_0 = arith.constant 0 : i32
    %c0_i32_1 = arith.constant 0 : i32
    return %c0_i32, %c0_i32_0 : i32, i32
  }
  func.func @transform_2(%arg0: i32) -> (i32, i32) {
    %c0_i32 = arith.constant 0 : i32
    %c0_i32_0 = arith.constant 0 : i32
    %c0_i32_1 = arith.constant 0 : i32
    return %c0_i32, %c0_i32_0 : i32, i32
  }
  func.func @transform_3(%arg0: i32) -> (i32, i32) {
    %c0_i32 = arith.constant 0 : i32
    %c0_i32_0 = arith.constant 0 : i32
    %c0_i32_1 = arith.constant 0 : i32
    return %c0_i32, %c0_i32_0 : i32, i32
  }
  func.func @transform_4(%arg0: i32) -> (i32, i32) {
    %c0_i32 = arith.constant 0 : i32
    %c0_i32_0 = arith.constant 0 : i32
    %c0_i32_1 = arith.constant 0 : i32
    return %c0_i32, %c0_i32_0 : i32, i32
  }
  func.func @transform_5(%arg0: i32) -> (i32, i32) {
    %c0_i32 = arith.constant 0 : i32
    %c0_i32_0 = arith.constant 0 : i32
    return %arg0, %c0_i32 : i32, i32
  }
}

</mosaic_0001>

<llo_original>
// kernel: tpu_custom_call.1
$region0: #{tpu_custom_call.1}
  #allocation0 [shape = 'u32[]', space=smem, size = 0x4, offset = 0x4, fixed_abs, tag = 'smem constant byte address 0x4 - core index']
  #allocation1 [shape = 'u32[72,128]{1,0:T(1,128)}', space=vmem, size = 0x9000, scoped, tag = 'internal scratch']
  %s0 = inlined_call_operand.vmem [shape: f32[8,16], index: 0, kind: input, shape index: {}]
  %s1 = inlined_call_operand.vmem [shape: bf16[16,32], index: 1, kind: input, shape index: {}]
  %s2 = inlined_call_operand.vmem [shape: f32[1,32], index: 2, kind: input, shape index: {}]
  %s3 = inlined_call_operand.vmem [shape: bf16[32,2], index: 3, kind: input, shape index: {}]
  %s4 = inlined_call_operand.vmem [shape: f32[1,2], index: 4, kind: input, shape index: {}]
  %s5 = inlined_call_operand.vmem [shape: f32[8,2], index: 5, kind: output, shape index: {}]
  %s6 = sld [smem:[#allocation0]]
  $region30: #{tpu_custom_call.1} parent=0
    _
  %s8 = ssub.s32 1, %s6
  %s9 = scalar_select 0, %s8, %s6
  // Predicated region
  $region2: #{tpu_custom_call.1} parent=0 // pred_check
    _
  $region3: #{tpu_custom_call.1} parent=0 // pred_check_branch
    %11 = sbr.rel (0) target = $region5
  $region4: #{tpu_custom_call.1} parent=0 // pred_region
    _
  $region5: #{tpu_custom_call.1} parent=0 // pred_fallthru
    _
  // Predicated region
  $region6: #{tpu_custom_call.1} parent=0 // pred_check
    _
  $region7: #{tpu_custom_call.1} parent=0 // pred_check_branch
    %13 = sbr.rel (0) target = $region9
  $region8: #{tpu_custom_call.1} parent=0 // pred_region
    _
  $region9: #{tpu_custom_call.1} parent=0 // pred_fallthru
    _
  // Predicated region
  $region10: #{tpu_custom_call.1} parent=0 // pred_check
    _
  $region11: #{tpu_custom_call.1} parent=0 // pred_check_branch
    %15 = sbr.rel (0) target = $region13
  $region12: #{tpu_custom_call.1} parent=0 // pred_region
    _
  $region13: #{tpu_custom_call.1} parent=0 // pred_fallthru
    _
  // Predicated region
  $region14: #{tpu_custom_call.1} parent=0 // pred_check
    _
  $region15: #{tpu_custom_call.1} parent=0 // pred_check_branch
    %17 = sbr.rel (0) target = $region17
  $region16: #{tpu_custom_call.1} parent=0 // pred_region
    _
  $region17: #{tpu_custom_call.1} parent=0 // pred_fallthru
    _
  // Predicated region
  $region18: #{tpu_custom_call.1} parent=0 // pred_check
    _
  $region19: #{tpu_custom_call.1} parent=0 // pred_check_branch
    %19 = sbr.rel (0) target = $region21
  $region20: #{tpu_custom_call.1} parent=0 // pred_region
    _
  $region21: #{tpu_custom_call.1} parent=0 // pred_fallthru
    _
  %v21 = vld [vmem:[%s0] sm:$0xff]
  %v22 = vpack.c.bf16 %v21, %v21
  %v23 = vld [vmem:[%s1] sm:$0xf]
  %v24 = vld [vmem:[%s1 + $0x4] sm:$0xf]
  %v25 = vld [vmem:[%s2] sm:$0x1]
  %v27 = vperm.slane %v25, 0
  %v31 = vunpack.c.l.b16 %v23
  %v32 = vunpack.c.l.b16 %v24
  %v33 = vpack.c.b16 %v32, %v31
  %vm35 = vcmask 130048
  %v37 = vsel %vm35, %v22, 0
  %39 = vmatpush.bf16.msra.mxu0 0
  %40 = vmatpush.bf16.msra.mxu0 0
  %41 = vmatpush.bf16.msra.mxu0 0
  %42 = vmatpush.bf16.msra.mxu0 0
  %43 = vmatpush.bf16.msra.mxu0 0
  %44 = vmatpush.bf16.msra.mxu0 0
  %45 = vmatpush.bf16.msra.mxu0 0
  %46 = vmatpush.bf16.msra.mxu0 %v33
  %47 = vmatmul.bf16.gmra.mxu0 %v37
  %v48 = vpop.f32.mrf.mxu0
  %v49 = vadd.f32 %v27, %v48
  %v50 = vpop.f32.mrf.mxu0
  %51 = vdwg.mxu0
  %v52 = vmax.f32 %v49, 0.0
  %v53 = vpack.c.bf16 %v52, %v52
  %v54 = vld [vmem:[%s3] sm:$0xf]
  %v55 = vld [vmem:[%s3 + $0x4] sm:$0xf]
  %v56 = vld [vmem:[%s3 + $0x8] sm:$0xf]
  %v57 = vld [vmem:[%s3 + $0xc] sm:$0xf]
  %v58 = vld [vmem:[%s4] sm:$0x1]
  %v60 = vperm.slane %v58, 0
  %v66 = vunpack.c.l.b16 %v54
  %v67 = vunpack.c.l.b16 %v55
  %v68 = vunpack.c.l.b16 %v56
  %v69 = vunpack.c.l.b16 %v57
  %v70 = vpack.c.b16 %v67, %v66
  %v71 = vpack.c.b16 %v69, %v68
  %vm74 = vcmask 261120
  %v76 = vsel %vm74, %v53, 0
  %78 = vmatpush.bf16.msra.mxu0 0
  %79 = vmatpush.bf16.msra.mxu0 0
  %80 = vmatpush.bf16.msra.mxu0 0
  %81 = vmatpush.bf16.msra.mxu0 0
  %82 = vmatpush.bf16.msra.mxu0 0
  %83 = vmatpush.bf16.msra.mxu0 0
  %84 = vmatpush.bf16.msra.mxu0 %v71
  %85 = vmatpush.bf16.msra.mxu0 %v70
  %86 = vmatmul.bf16.gmra.mxu0 %v76
  %v87 = vpop.f32.mrf.mxu0
  %v88 = vadd.f32 %v60, %v87
  %v89 = vpop.f32.mrf.mxu0
  %90 = vdwg.mxu0
  %vm91 = vcmask 15360
  %92 = vst.msk [vmem:[%s5] sm:$0xff] %vm91, %v88
  // Predicated region
  $region22: #{tpu_custom_call.1} parent=0 // pred_check
    _
  $region23: #{tpu_custom_call.1} parent=0 // pred_check_branch
    %94 = sbr.rel (0) target = $region25
  $region24: #{tpu_custom_call.1} parent=0 // pred_region
    _
  $region25: #{tpu_custom_call.1} parent=0 // pred_fallthru
    _
  // Predicated region
  $region26: #{tpu_custom_call.1} parent=0 // pred_check
    _
  $region27: #{tpu_custom_call.1} parent=0 // pred_check_branch
    %96 = sbr.rel (0) target = $region29
  $region28: #{tpu_custom_call.1} parent=0 // pred_region
    _
  $region29: #{tpu_custom_call.1} parent=0 // pred_fallthru
    _

</llo_original>
